<compile_context>
chip_gen: v5e
topology: v5e:2x2
jax: 0.10.0
libtpu: 0.0.40
codegen_flags: <defaults>
</compile_context>

<pallas_src>
import functools

import jax
import jax.numpy as jnp
from jax import lax
from jax.experimental import pallas as pl
from jax.experimental.pallas import tpu as pltpu


STRIP = 8            # points per inner strip (sublane granularity)
TILE_P_MAX = 512     # max points per grid step (multiple of STRIP)
TILE_N = 128         # structure elements per tile (lane axis)
NEG_BIAS = -1e30     # additive mask bias: exp() -> 0; finite in bf16 as well


def _round_up(x, m):
    return ((x + m - 1) // m) * m


def _eup_supports_bf16():
    """True on TPU generations with a bf16 EUP/VPU (v6e, v7x); False otherwise."""
    try:
        kind = jax.devices()[0].device_kind.lower()
    except Exception:
        return False
    if "tpu" not in kind:
        return False
    for old in ("v2", "v3", "v4", "v5"):
        if old in kind:
            return False
    return True


def _slayer_kernel(x_ref, bias_ref, w_ref, out_ref, *, strip, use_bf16_exp):
    """One (b, n_tile, p_tile) grid step of the masked-gaussian reduction.

    x_ref:    (D, 1, TP, 1)  point coordinates, coordinate-major, one batch elem
    bias_ref: (1, TP, 1)     additive mask bias (0 = real point, NEG = masked/pad)
    w_ref:    (2D+1, TN)     rows [0:D)=+2*s*c, [D:2D)=-s, [2D]=-sum_d s*c^2
    out_ref:  (1, 1, TN)     output tile, accumulated across the P (last) grid axis
    """
    p_idx = pl.program_id(2)

    @pl.when(p_idx == 0)
    def _init():
        out_ref[...] = jnp.zeros_like(out_ref)

    D = x_ref.shape[0]
    TP = x_ref.shape[2]
    TN = w_ref.shape[1]
    n_strips = TP // strip

    # Loop-invariant weight rows, broadcast to strip height once (hoisted out of
    # the strip loop; JAX does not CSE broadcast_in_dim).
    w = w_ref[...]                                               # (2D+1, TN), tiny
    w_lin = [jnp.broadcast_to(w[d:d + 1, :], (strip, TN)) for d in range(D)]
    w_quad = [jnp.broadcast_to(w[D + d:D + d + 1, :], (strip, TN)) for d in range(D)]
    w_const = jnp.broadcast_to(w[2 * D:2 * D + 1, :], (strip, TN))

    def body(s, acc):
        off = pl.multiple_of(s * strip, strip)
        # z = -dist2 + mask_bias  (weights pre-negated in the wrapper)
        z = w_const + jnp.broadcast_to(bias_ref[0, pl.ds(off, strip), :],
                                       (strip, TN))
        for d in range(D):                                       # static unroll, D tiny
            x_d = jnp.broadcast_to(x_ref[d, 0, pl.ds(off, strip), :],
                                   (strip, TN))
            z = z + x_d * (x_d * w_quad[d] + w_lin[d])
        if use_bf16_exp:
            # Only the exp argument goes bf16; dist2 math and accumulation stay f32.
            g = jnp.exp(z.astype(jnp.bfloat16)).astype(jnp.float32)
        else:
            g = jnp.exp(z)
        return acc + g

    acc = lax.fori_loop(0, n_strips, body,
                        jnp.zeros((strip, TN), jnp.float32), unroll=True)
    out_ref[...] += jnp.sum(acc, axis=0, keepdims=True)[None]    # (1, 1, TN)


def slayer_forward(diagrams, masks, centers, sharpness, *,
                   tile_p_max=TILE_P_MAX, tile_n=TILE_N, strip=STRIP):
    """diagrams: (B, P, D), masks: (B, P) -> squeeze((B, N)), like the torch module."""
    diagrams = diagrams.astype(jnp.float32)
    masks = masks.astype(jnp.float32)
    centers = centers.astype(jnp.float32)
    sharpness = sharpness.astype(jnp.float32)

    B, P, D = diagrams.shape
    N = centers.shape[0]

    # Point axis: pad only to sublane granularity; cap the per-step tile.
    p8 = _round_up(max(P, strip), strip)
    tile_p = min(_round_up(tile_p_max, strip), p8)
    p_pad = _round_up(p8, tile_p)
    # Element axis: lane-dense tiles of 128.
    n_pad = _round_up(N, tile_n)

    use_bf16_exp = _eup_supports_bf16()

    # Coordinate-major point tensor (D, B, P, 1): x_ref[d] is a leading-axis
    # select whose trailing-1 dim lane-broadcasts cheaply in the kernel.
    x = jnp.transpose(diagrams, (2, 0, 1))[..., None]
    x = jnp.pad(x, ((0, 0), (0, 0), (0, p_pad - P), (0, 0)))

    # Additive mask bias: 0 for real points, NEG for masked and padded points.
    bias = jnp.where(masks > 0, 0.0, NEG_BIAS).astype(jnp.float32)[:, :, None]
    bias = jnp.pad(bias, ((0, 0), (0, p_pad - P), (0, 0)),
                   constant_values=NEG_BIAS)

    # Pre-negated expanded-quadratic constants, computed once outside the kernel:
    #   -dist2 = -sum_d s*c^2 + 2*sum_d (s*c)*x - sum_d s*x^2
    sc = sharpness * centers                                     # (N, D)
    w = jnp.concatenate(
        [(2.0 * sc).T,                                           # rows [0:D)
         (-sharpness).T,                                         # rows [D:2D)
         (-jnp.sum(sc * centers, axis=-1))[None, :]],            # row  [2D]
        axis=0)                                                  # (2D+1, N)
    w = jnp.pad(w, ((0, 0), (0, n_pad - N)))                     # zero cols, sliced off

    grid = (B, n_pad // tile_n, p_pad // tile_p)                 # reduction (P) last

    kernel = functools.partial(_slayer_kernel, strip=strip,
                               use_bf16_exp=use_bf16_exp)

    out = pl.pallas_call(
        kernel,
        out_shape=jax.ShapeDtypeStruct((B, 1, n_pad), jnp.float32),
        grid_spec=pltpu.PrefetchScalarGridSpec(
            num_scalar_prefetch=0,
            grid=grid,
            in_specs=[
                pl.BlockSpec((D, 1, tile_p, 1), lambda b, n, p: (0, b, p, 0)),
                pl.BlockSpec((1, tile_p, 1), lambda b, n, p: (b, p, 0)),
                pl.BlockSpec((2 * D + 1, tile_n), lambda b, n, p: (0, n)),
            ],
            out_specs=pl.BlockSpec((1, 1, tile_n), lambda b, n, p: (b, 0, n)),
        ),
        compiler_params=pltpu.CompilerParams(
            dimension_semantics=("parallel", "parallel", "arbitrary"),
        ),
    )(x, bias, w)

    # Drop padding, then torch-style .squeeze() of all size-1 dims
    # (intentionally collapses B==1, matching the PyTorch module).
    return jnp.squeeze(out[:, 0, :N])


def slayer_reference(diagrams, masks, centers, sharpness):
    """Pure-JAX reference mirroring the PyTorch forward."""
    diff = centers[None, None, :, :] - diagrams[:, :, None, :]        # (B, P, N, D)
    dist2 = jnp.sum(sharpness[None, None] * diff * diff, axis=-1)     # (B, P, N)
    g = jnp.exp(-dist2) * masks[:, :, None].astype(jnp.float32)
    return jnp.squeeze(jnp.sum(g, axis=1))                            # (B, N)


if __name__ == "__main__":
    # Small shapes consistent with the module: batch=2, max_points=16,
    # point_dimension=2, n_elements=32.
    B, P, D, N = 2, 16, 2, 32

    key = jax.random.PRNGKey(0)
    k1, k2, k3 = jax.random.split(key, 3)

    diagrams = jax.random.uniform(k1, (B, P, D), dtype=jnp.float32)
    # boolean multiset mask (1 = real point, 0 = padding), cast to float
    masks = (jax.random.uniform(k2, (B, P)) > 0.3).astype(jnp.float32)

    # Deterministic parameter init (matches __init__ defaults):
    #   centers ~ U[0,1) of shape (n_elements, point_dimension)
    #   sharpness = 3 * ones(n_elements, point_dimension)
    centers = jax.random.uniform(k3, (N, D), dtype=jnp.float32)
    sharpness = jnp.ones((N, D), dtype=jnp.float32) * 3.0

    fwd = jax.jit(slayer_forward)
    out = jax.block_until_ready(fwd(diagrams, masks, centers, sharpness))

    ref = slayer_reference(diagrams, masks, centers, sharpness)
    assert out.shape == (B, N), out.shape

    if _eup_supports_bf16():
        atol, rtol = 3e-2, 2e-2   # bf16 exp path (v6e / v7x)
    else:
        atol, rtol = 1e-4, 1e-4   # f32 path (v5e and older)
    assert jnp.allclose(out, ref, atol=atol, rtol=rtol), "mismatch vs reference"

    print("KERNEL_OK")
</pallas_src>

<mosaic_0001>
module attributes {stable_mosaic.version = 11 : i64} {
  func.func @_slayer_kernel(%arg0: i32, %arg1: i32, %arg2: i32, %arg3: memref<2x1x16x1xf32, #tpu.memory_space<vmem>>, %arg4: memref<1x16x1xf32, #tpu.memory_space<vmem>>, %arg5: memref<5x128xf32, #tpu.memory_space<vmem>>, %arg6: memref<1x1x128xf32, #tpu.memory_space<vmem>>) attributes {dimension_semantics = [#tpu.dimension_semantics<parallel>, #tpu.dimension_semantics<parallel>, #tpu.dimension_semantics<arbitrary>], iteration_bounds = array<i64: 2, 1, 1>, scalar_prefetch = 0 : i64, scratch_operands = 0 : i64, tpu.core_type = #tpu.core_type<tc>, window_params = [{transform_indices = @transform_0, window_bounds = array<i64: 2, 1, 16, 1>}, {transform_indices = @transform_1, window_bounds = array<i64: 1, 16, 1>}, {transform_indices = @transform_2, window_bounds = array<i64: 5, 128>}, {transform_indices = @transform_3, window_bounds = array<i64: 1, 1, 128>}]} {
    %c0_i32 = arith.constant 0 : i32
    %0 = arith.cmpi eq, %arg2, %c0_i32 : i32
    %1 = arith.extui %0 : i1 to i32
    %c0_i32_0 = arith.constant 0 : i32
    %2 = arith.cmpi ne, %1, %c0_i32_0 : i32
    scf.if %2 {
      %cst_26 = arith.constant 0.000000e+00 : f32
      %82 = vector.broadcast %cst_26 : f32 to vector<1x1x128xf32>
      %c0_27 = arith.constant 0 : index
      %c0_28 = arith.constant 0 : index
      %c0_29 = arith.constant 0 : index
      %83 = vector.load %arg6[%c0_27, %c0_28, %c0_29] : memref<1x1x128xf32, #tpu.memory_space<vmem>>, vector<1x1x128xf32>
      tpu.vector_store %arg6[%c0_27, %c0_28, %c0_29], %82 {strides = array<i32>} : memref<1x1x128xf32, #tpu.memory_space<vmem>>, vector<1x1x128xf32>,
    } else {
    }
    %c0 = arith.constant 0 : index
    %c0_1 = arith.constant 0 : index
    %3 = vector.load %arg5[%c0, %c0_1] : memref<5x128xf32, #tpu.memory_space<vmem>>, vector<5x128xf32>
    %4 = vector.extract_strided_slice %3 {offsets = [0, 0], sizes = [1, 128], strides = [1, 1]} : vector<5x128xf32> to vector<1x128xf32>
    %5 = vector.shape_cast %4 : vector<1x128xf32> to vector<1x128xf32>
    %6 = vector.broadcast %5 : vector<1x128xf32> to vector<8x128xf32>
    %7 = vector.extract_strided_slice %3 {offsets = [1, 0], sizes = [1, 128], strides = [1, 1]} : vector<5x128xf32> to vector<1x128xf32>
    %8 = vector.shape_cast %7 : vector<1x128xf32> to vector<1x128xf32>
    %9 = vector.broadcast %8 : vector<1x128xf32> to vector<8x128xf32>
    %10 = vector.extract_strided_slice %3 {offsets = [2, 0], sizes = [1, 128], strides = [1, 1]} : vector<5x128xf32> to vector<1x128xf32>
    %11 = vector.shape_cast %10 : vector<1x128xf32> to vector<1x128xf32>
    %12 = vector.broadcast %11 : vector<1x128xf32> to vector<8x128xf32>
    %13 = vector.extract_strided_slice %3 {offsets = [3, 0], sizes = [1, 128], strides = [1, 1]} : vector<5x128xf32> to vector<1x128xf32>
    %14 = vector.shape_cast %13 : vector<1x128xf32> to vector<1x128xf32>
    %15 = vector.broadcast %14 : vector<1x128xf32> to vector<8x128xf32>
    %16 = vector.extract_strided_slice %3 {offsets = [4, 0], sizes = [1, 128], strides = [1, 1]} : vector<5x128xf32> to vector<1x128xf32>
    %17 = vector.shape_cast %16 : vector<1x128xf32> to vector<1x128xf32>
    %18 = vector.broadcast %17 : vector<1x128xf32> to vector<8x128xf32>
    %cst = arith.constant 0.000000e+00 : f32
    %19 = vector.broadcast %cst : f32 to vector<8x128xf32>
    %c0_i32_2 = arith.constant 0 : i32
    %c8_i32 = arith.constant 8 : i32
    %20 = arith.muli %c0_i32_2, %c8_i32 : i32
    %21 = tpu.assume_multiple %20, 8 : i32
    %c0_3 = arith.constant 0 : index
    %22 = arith.index_cast %21 : i32 to index
    %c0_4 = arith.constant 0 : index
    %23 = vector.load %arg4[%c0_3, %22, %c0_4] : memref<1x16x1xf32, #tpu.memory_space<vmem>>, vector<1x8x1xf32>
    %24 = vector.shape_cast %23 : vector<1x8x1xf32> to vector<8x1xf32>
    %25 = vector.shape_cast %24 : vector<8x1xf32> to vector<8x1xf32>
    %26 = vector.broadcast %25 : vector<8x1xf32> to vector<8x128xf32>
    %27 = arith.addf %18, %26 : vector<8x128xf32>
    %c0_5 = arith.constant 0 : index
    %c0_6 = arith.constant 0 : index
    %28 = arith.index_cast %21 : i32 to index
    %c0_7 = arith.constant 0 : index
    %29 = vector.load %arg3[%c0_5, %c0_6, %28, %c0_7] : memref<2x1x16x1xf32, #tpu.memory_space<vmem>>, vector<1x1x8x1xf32>
    %30 = vector.shape_cast %29 : vector<1x1x8x1xf32> to vector<8x1xf32>
    %31 = vector.shape_cast %30 : vector<8x1xf32> to vector<8x1xf32>
    %32 = vector.broadcast %31 : vector<8x1xf32> to vector<8x128xf32>
    %33 = arith.mulf %32, %12 : vector<8x128xf32>
    %34 = arith.addf %33, %6 : vector<8x128xf32>
    %35 = arith.mulf %32, %34 : vector<8x128xf32>
    %36 = arith.addf %27, %35 : vector<8x128xf32>
    %c1 = arith.constant 1 : index
    %c0_8 = arith.constant 0 : index
    %37 = arith.index_cast %21 : i32 to index
    %c0_9 = arith.constant 0 : index
    %38 = vector.load %arg3[%c1, %c0_8, %37, %c0_9] : memref<2x1x16x1xf32, #tpu.memory_space<vmem>>, vector<1x1x8x1xf32>
    %39 = vector.shape_cast %38 : vector<1x1x8x1xf32> to vector<8x1xf32>
    %40 = vector.shape_cast %39 : vector<8x1xf32> to vector<8x1xf32>
    %41 = vector.broadcast %40 : vector<8x1xf32> to vector<8x128xf32>
    %42 = arith.mulf %41, %15 : vector<8x128xf32>
    %43 = arith.addf %42, %9 : vector<8x128xf32>
    %44 = arith.mulf %41, %43 : vector<8x128xf32>
    %45 = arith.addf %36, %44 : vector<8x128xf32>
    %46 = math.exp %45 : vector<8x128xf32>
    %47 = arith.addf %19, %46 : vector<8x128xf32>
    %c1_i32 = arith.constant 1 : i32
    %c8_i32_10 = arith.constant 8 : i32
    %48 = arith.muli %c1_i32, %c8_i32_10 : i32
    %49 = tpu.assume_multiple %48, 8 : i32
    %c0_11 = arith.constant 0 : index
    %50 = arith.index_cast %49 : i32 to index
    %c0_12 = arith.constant 0 : index
    %51 = vector.load %arg4[%c0_11, %50, %c0_12] : memref<1x16x1xf32, #tpu.memory_space<vmem>>, vector<1x8x1xf32>
    %52 = vector.shape_cast %51 : vector<1x8x1xf32> to vector<8x1xf32>
    %53 = vector.shape_cast %52 : vector<8x1xf32> to vector<8x1xf32>
    %54 = vector.broadcast %53 : vector<8x1xf32> to vector<8x128xf32>
    %55 = arith.addf %18, %54 : vector<8x128xf32>
    %c0_13 = arith.constant 0 : index
    %c0_14 = arith.constant 0 : index
    %56 = arith.index_cast %49 : i32 to index
    %c0_15 = arith.constant 0 : index
    %57 = vector.load %arg3[%c0_13, %c0_14, %56, %c0_15] : memref<2x1x16x1xf32, #tpu.memory_space<vmem>>, vector<1x1x8x1xf32>
    %58 = vector.shape_cast %57 : vector<1x1x8x1xf32> to vector<8x1xf32>
    %59 = vector.shape_cast %58 : vector<8x1xf32> to vector<8x1xf32>
    %60 = vector.broadcast %59 : vector<8x1xf32> to vector<8x128xf32>
    %61 = arith.mulf %60, %12 : vector<8x128xf32>
    %62 = arith.addf %61, %6 : vector<8x128xf32>
    %63 = arith.mulf %60, %62 : vector<8x128xf32>
    %64 = arith.addf %55, %63 : vector<8x128xf32>
    %c1_16 = arith.constant 1 : index
    %c0_17 = arith.constant 0 : index
    %65 = arith.index_cast %49 : i32 to index
    %c0_18 = arith.constant 0 : index
    %66 = vector.load %arg3[%c1_16, %c0_17, %65, %c0_18] : memref<2x1x16x1xf32, #tpu.memory_space<vmem>>, vector<1x1x8x1xf32>
    %67 = vector.shape_cast %66 : vector<1x1x8x1xf32> to vector<8x1xf32>
    %68 = vector.shape_cast %67 : vector<8x1xf32> to vector<8x1xf32>
    %69 = vector.broadcast %68 : vector<8x1xf32> to vector<8x128xf32>
    %70 = arith.mulf %69, %15 : vector<8x128xf32>
    %71 = arith.addf %70, %9 : vector<8x128xf32>
    %72 = arith.mulf %69, %71 : vector<8x128xf32>
    %73 = arith.addf %64, %72 : vector<8x128xf32>
    %74 = math.exp %73 : vector<8x128xf32>
    %75 = arith.addf %47, %74 : vector<8x128xf32>
    %c2_i32 = arith.constant 2 : i32
    %c0_19 = arith.constant 0 : index
    %c0_20 = arith.constant 0 : index
    %c0_21 = arith.constant 0 : index
    %76 = vector.load %arg6[%c0_19, %c0_20, %c0_21] : memref<1x1x128xf32, #tpu.memory_space<vmem>>, vector<1x1x128xf32>
    %cst_22 = arith.constant dense<0.000000e+00> : vector<128xf32>
    %77 = vector.multi_reduction <add>, %75, %cst_22 [0] : vector<8x128xf32> to vector<128xf32>
    %78 = vector.shape_cast %77 : vector<128xf32> to vector<1x128xf32>
    %79 = vector.shape_cast %78 : vector<1x128xf32> to vector<1x1x128xf32>
    %80 = arith.addf %76, %79 : vector<1x1x128xf32>
    %c0_23 = arith.constant 0 : index
    %c0_24 = arith.constant 0 : index
    %c0_25 = arith.constant 0 : index
    %81 = vector.load %arg6[%c0_23, %c0_24, %c0_25] : memref<1x1x128xf32, #tpu.memory_space<vmem>>, vector<1x1x128xf32>
    tpu.vector_store %arg6[%c0_23, %c0_24, %c0_25], %80 {strides = array<i32>} : memref<1x1x128xf32, #tpu.memory_space<vmem>>, vector<1x1x128xf32>,
    return
  }
  func.func @transform_0(%arg0: i32, %arg1: i32, %arg2: i32) -> (i32, i32, i32, i32) {
    %c0_i32 = arith.constant 0 : i32
    %c0_i32_0 = arith.constant 0 : i32
    %c0_i32_1 = arith.constant 0 : i32
    return %c0_i32, %arg0, %arg2, %c0_i32_0 : i32, i32, i32, i32
  }
  func.func @transform_1(%arg0: i32, %arg1: i32, %arg2: i32) -> (i32, i32, i32) {
    %c0_i32 = arith.constant 0 : i32
    %c0_i32_0 = arith.constant 0 : i32
    return %arg0, %arg2, %c0_i32 : i32, i32, i32
  }
  func.func @transform_2(%arg0: i32, %arg1: i32, %arg2: i32) -> (i32, i32) {
    %c0_i32 = arith.constant 0 : i32
    %c0_i32_0 = arith.constant 0 : i32
    return %c0_i32, %arg1 : i32, i32
  }
  func.func @transform_3(%arg0: i32, %arg1: i32, %arg2: i32) -> (i32, i32, i32) {
    %c0_i32 = arith.constant 0 : i32
    %c0_i32_0 = arith.constant 0 : i32
    return %arg0, %c0_i32, %arg1 : i32, i32, i32
  }
}

</mosaic_0001>

<llo_original>
// kernel: slayer_forward.1
$region0: #{slayer_forward.1}
  #allocation0 [shape = 'u32[]', space=smem, size = 0x4, offset = 0x4, fixed_abs, tag = 'smem constant byte address 0x4 - core index']
  #allocation1 [shape = 'u32[72,128]{1,0:T(1,128)}', space=vmem, size = 0x9000, scoped, tag = 'internal scratch']
  %s0 = inlined_call_operand.vmem [shape: f32[2,2,16,1], index: 0, kind: input, shape index: {}]
  %s1 = inlined_call_operand.vmem [shape: f32[2,16,1], index: 1, kind: input, shape index: {}]
  %s2 = inlined_call_operand.vmem [shape: f32[5,128], index: 2, kind: input, shape index: {}]
  %s3 = inlined_call_operand.hbm [shape: f32[2,1,128], index: 3, kind: output, shape index: {}]
  %s4 = sld [smem:[#allocation0]]
  $region87: #{slayer_forward.1} parent=0
    _
  %s6 = ssub.s32 1, %s4
  %s7 = scalar_select 0, %s6, %s4
  $region1: #{slayer_forward.1} parent=0
    #allocation2 [shape = 'u8[32768]{0}', space=vmem, size = 0x8000, scoped, tag = 'input window, operand 0']
    #allocation3 [shape = 'u8[1024]{0}', space=vmem, size = 0x400, scoped, tag = 'output window, operand 0']
    #allocation4 [shape = 's32[2]{0}', space=sflag, size = 0x8, scoped, tag = 'scoped memory for slayer_forward.1']
    %8 = vsyncpa [#allocation4], 0
    %s9 = scalar_lea.sflag [#allocation4], 1
    %10 = vsyncpa %s9, 0
    loop: start=0, step=1, limit=4
    $region2: #{slayer_forward.1} parent=1 // loop_pre_header
      _
    $region3: #{slayer_forward.1} parent=1 // loop_header
      %s12 = sphi 0, %s16
      %p13 = scmp.ge.s32.totalorder %s12, 4
      %s19 = sphi 0, %s38
      %s20 = sphi 0, %s34
      %s21 = sphi 0, %s30
      %s22 = sphi 0, %s19
      %s23 = sphi 0, %s20
      %s24 = sphi 0, %s21
      %s25 = sphi 0, %s22
      %s26 = sphi 0, %s23
      %s27 = sphi 0, %s24
      %s43 = sphi 0, %s45
      %s46 = sphi 0, %s43
      %s47 = sphi 0, %s46
      %s63 = sphi 0, %s47
      %s71 = sphi 0, %s73
      %s74 = sphi 0, %s71
      %s75 = sphi 0, %s74
      %s91 = sphi 0, %s75
      %s97 = sphi 0, %s99
      %s100 = sphi 0, %s97
      %s101 = sphi 0, %s100
      %s117 = sphi 0, %s101
      %s125 = sphi 0, %s127
      %s128 = sphi 0, %s125
      %s129 = sphi 0, %s128
      %s145 = sphi 0, %s129
    $region4: #{slayer_forward.1} parent=1 // loop_header_branch
      %15 = sbr.rel (%p13) target = $region8
    $region5: #{slayer_forward.1} parent=1 // loop_body
      %s17 = ssub.s32 %s12, 1
      %s18 = ssub.s32 %s12, 2
      %s28 = sadd.s32 1, %s21
      %p29 = scmp.ge.s32.totalorder %s28, 1
      %s30 = scalar_select %p29, 0, %s28
      %s31 = sadd.s32 1, %s20
      %s32 = scalar_select %p29, %s31, %s20
      %p33 = scmp.ge.s32.totalorder %s32, 1
      %s34 = scalar_select %p33, 0, %s32
      %s35 = sadd.s32 1, %s19
      %s36 = scalar_select %p33, %s35, %s19
      %p37 = scmp.ge.s32.totalorder %s36, 2
      %s38 = scalar_select %p37, 0, %s36
      %s39 = ssub.s32 %s19, %s38
      %s40 = ssub.s32 %s21, %s30
      %s41 = sor.u32 %s39, %s40
      %p42 = scmp.eq.s32.totalorder %s41, 0
      %s44 = sadd.s32 %s43, 1
      %s45 = scalar_select %p42, %s43, %s44
      %p48 = pneg %p42
      %p49 = scmp.eq.s32.totalorder %s12, 1
      %p50 = por %p48, %p49
      %p51 = scmp.ne.s32.totalorder %s43, %s46
      %p52 = scmp.eq.s32.totalorder %s12, 0
      %p53 = por %p51, %p52
      %p54 = scmp.ne.s32.totalorder %s43, %s46
      %p55 = scmp.eq.s32.totalorder %s17, 1
      %p56 = por %p54, %p55
      %p57 = scmp.ne.s32.totalorder %s46, %s47
      %p58 = scmp.eq.s32.totalorder %s17, 0
      %p59 = por %p57, %p58
      %p60 = scmp.ne.s32.totalorder %s46, %s47
      %p61 = scmp.eq.s32.totalorder %s18, 1
      %p62 = por %p60, %p61
      %p64 = scmp.ne.s32.totalorder %s47, %s63
      %p65 = scmp.eq.s32.totalorder %s18, 0
      %p66 = por %p64, %p65
      %s67 = ssub.s32 %s19, %s38
      %s68 = ssub.s32 %s21, %s30
      %s69 = sor.u32 %s67, %s68
      %p70 = scmp.eq.s32.totalorder %s69, 0
      %s72 = sadd.s32 %s71, 1
      %s73 = scalar_select %p70, %s71, %s72
      %p76 = pneg %p70
      %p77 = scmp.eq.s32.totalorder %s12, 1
      %p78 = por %p76, %p77
      %p79 = scmp.ne.s32.totalorder %s71, %s74
      %p80 = scmp.eq.s32.totalorder %s12, 0
      %p81 = por %p79, %p80
      %p82 = scmp.ne.s32.totalorder %s71, %s74
      %p83 = scmp.eq.s32.totalorder %s17, 1
      %p84 = por %p82, %p83
      %p85 = scmp.ne.s32.totalorder %s74, %s75
      %p86 = scmp.eq.s32.totalorder %s17, 0
      %p87 = por %p85, %p86
      %p88 = scmp.ne.s32.totalorder %s74, %s75
      %p89 = scmp.eq.s32.totalorder %s18, 1
      %p90 = por %p88, %p89
      %p92 = scmp.ne.s32.totalorder %s75, %s91
      %p93 = scmp.eq.s32.totalorder %s18, 0
      %p94 = por %p92, %p93
      %s95 = ssub.s32 %s20, %s34
      %p96 = scmp.eq.s32.totalorder %s95, 0
      %s98 = sadd.s32 %s97, 1
      %s99 = scalar_select %p96, %s97, %s98
      %p102 = pneg %p96
      %p103 = scmp.eq.s32.totalorder %s12, 1
      %p104 = por %p102, %p103
      %p105 = scmp.ne.s32.totalorder %s97, %s100
      %p106 = scmp.eq.s32.totalorder %s12, 0
      %p107 = por %p105, %p106
      %p108 = scmp.ne.s32.totalorder %s97, %s100
      %p109 = scmp.eq.s32.totalorder %s17, 1
      %p110 = por %p108, %p109
      %p111 = scmp.ne.s32.totalorder %s100, %s101
      %p112 = scmp.eq.s32.totalorder %s17, 0
      %p113 = por %p111, %p112
      %p114 = scmp.ne.s32.totalorder %s100, %s101
      %p115 = scmp.eq.s32.totalorder %s18, 1
      %p116 = por %p114, %p115
      %p118 = scmp.ne.s32.totalorder %s101, %s117
      %p119 = scmp.eq.s32.totalorder %s18, 0
      %p120 = por %p118, %p119
      %s121 = ssub.s32 %s19, %s38
      %s122 = ssub.s32 %s20, %s34
      %s123 = sor.u32 %s121, %s122
      %p124 = scmp.eq.s32.totalorder %s123, 0
      %s126 = sadd.s32 %s125, 1
      %s127 = scalar_select %p124, %s125, %s126
      %p130 = pneg %p124
      %p131 = scmp.eq.s32.totalorder %s12, 1
      %p132 = por %p130, %p131
      %p133 = scmp.ne.s32.totalorder %s125, %s128
      %p134 = scmp.eq.s32.totalorder %s12, 0
      %p135 = por %p133, %p134
      %p136 = scmp.ne.s32.totalorder %s125, %s128
      %p137 = scmp.eq.s32.totalorder %s17, 1
      %p138 = por %p136, %p137
      %p139 = scmp.ne.s32.totalorder %s128, %s129
      %p140 = scmp.eq.s32.totalorder %s17, 0
      %p141 = por %p139, %p140
      %p142 = scmp.ne.s32.totalorder %s128, %s129
      %p143 = scmp.eq.s32.totalorder %s18, 1
      %p144 = por %p142, %p143
      %p146 = scmp.ne.s32.totalorder %s129, %s145
      %p147 = scmp.eq.s32.totalorder %s18, 0
      %p148 = por %p146, %p147
      %p149 = scmp.le.s32.totalorder 1, %s12
      %p150 = scmp.lt.s32.totalorder %s12, 3
      %p151 = pnand %p149, %p150
      %p152 = pneg %p151
      // Predicated region
      $region9: #{slayer_forward.1} parent=5 // pred_check
        _
      $region10: #{slayer_forward.1} parent=5 // pred_check_branch
        %154 = sbr.rel (%p151) target = $region12
      $region11: #{slayer_forward.1} parent=5 // pred_region
        %s155 = ssub.s32 %s12, 1
        // Predicated region
        $region13: #{slayer_forward.1} parent=11 // pred_check
          %p156 = pneg %p113
        $region14: #{slayer_forward.1} parent=11 // pred_check_branch
          %158 = sbr.rel (%p156) target = $region16
        $region15: #{slayer_forward.1} parent=11 // pred_region
          %p159 = scmp.lt.s32.totalorder %s23, 0
          %s160 = scalar_select %p159, %s23, 0
          %s161 = smul.addr %s160, 8
          %s162 = scalar_lea.vmem %s2, %s161
        $region16: #{slayer_forward.1} parent=11 // pred_fallthru
          _
      $region12: #{slayer_forward.1} parent=5 // pred_fallthru
        _
      %p163 = scmp.lt.s32.totalorder %s12, 2
      // Predicated region
      $region17: #{slayer_forward.1} parent=5 // pred_check
        %p164 = pneg %p163
      $region18: #{slayer_forward.1} parent=5 // pred_check_branch
        %166 = sbr.rel (%p164) target = $region20
      $region19: #{slayer_forward.1} parent=5 // pred_region
        // Predicated region
        $region21: #{slayer_forward.1} parent=19 // pred_check
          %p167 = pneg %p53
        $region22: #{slayer_forward.1} parent=19 // pred_check_branch
          %169 = sbr.rel (%p167) target = $region24
        $region23: #{slayer_forward.1} parent=19 // pred_region
          %s170 = sand.u32 %s43, 1
          %s171 = sand.u32 %s43, 1
          %s172 = smul.addr %s171, 32
          %s173 = scalar_lea.vmem [#allocation2], %s172
          %s174 = smul.u32 2, %s21
          %s175 = smul.addr %s19, 2
          %s176 = sadd.s32 %s174, %s175
          %s177 = smul.addr %s176, 8
          %s178 = scalar_lea.vmem %s0, %s177
          // Predicated region
          $region25: #{slayer_forward.1} parent=23 // pred_check
            _
          $region26: #{slayer_forward.1} parent=23 // pred_check_branch
            %180 = sbr.rel (0) target = $region28
          $region27: #{slayer_forward.1} parent=23 // pred_region
            // Predicated region
            $region29: #{slayer_forward.1} parent=27 // pred_check
              _
            $region30: #{slayer_forward.1} parent=27 // pred_check_branch
              %182 = sbr.rel (0) target = $region32
            $region31: #{slayer_forward.1} parent=27 // pred_region
              // Predicated region
              $region44: #{slayer_forward.1} parent=31 // pred_check
                _
              $region45: #{slayer_forward.1} parent=31 // pred_check_branch
                %204 = sbr.rel (0) target = $region47
              $region46: #{slayer_forward.1} parent=31 // pred_region
                loop: start=0, step=1, limit=1
                $region48: #{slayer_forward.1} parent=46 // loop_pre_header
                  _
                $region49: #{slayer_forward.1} parent=46 // loop_header
                  %s206 = sphi 0, %s210
                  %p207 = scmp.ge.s32.totalorder %s206, 1
                  %s211 = sphi %s178, %s178
                  %s212 = sphi %s173, %s173
                $region50: #{slayer_forward.1} parent=46 // loop_header_branch
                  %209 = sbr.rel (%p207) target = $region54
                $region51: #{slayer_forward.1} parent=46 // loop_body
                  %v213 = vld [vmem:[%s211] sm:$0xff]
                  %214 = vst [vmem:[%s212] sm:$0xff] %v213
                  %v215 = vld [vmem:[%s211 + $0x8] sm:$0xff]
                  %216 = vst [vmem:[%s212 + $0x8] sm:$0xff] %v215
                  %v217 = vld [vmem:[%s211 + $0x20] sm:$0xff]
                  %218 = vst [vmem:[%s212 + $0x10] sm:$0xff] %v217
                  %v219 = vld [vmem:[%s211 + $0x28] sm:$0xff]
                  %220 = vst [vmem:[%s212 + $0x18] sm:$0xff] %v219
                $region52: #{slayer_forward.1} parent=46 // loop_footer
                  %s210 = sadd.s32 1, %s206
                $region53: #{slayer_forward.1} parent=46 // loop_footer_branch
                  %205 = sbr.rel target = $region49
                $region54: #{slayer_forward.1} parent=46 // loop_exit
                  _
              $region47: #{slayer_forward.1} parent=31 // pred_fallthru
                _
              // Predicated region
              $region55: #{slayer_forward.1} parent=31 // pred_check
                _
              $region56: #{slayer_forward.1} parent=31 // pred_check_branch
                %222 = sbr.rel target = $region58
              $region57: #{slayer_forward.1} parent=31 // pred_region
                _
              $region58: #{slayer_forward.1} parent=31 // pred_fallthru
                _
            $region32: #{slayer_forward.1} parent=27 // pred_fallthru
              _
            // Predicated region
            $region33: #{slayer_forward.1} parent=27 // pred_check
              _
            $region34: #{slayer_forward.1} parent=27 // pred_check_branch
              %184 = sbr.rel target = $region36
            $region35: #{slayer_forward.1} parent=27 // pred_region
              %s186 = ssub.s32 256, 1
              loop: start=0, step=1, limit=1
              $region37: #{slayer_forward.1} parent=35 // loop_pre_header
                _
              $region38: #{slayer_forward.1} parent=35 // loop_header
                %s188 = sphi 0, %s192
                %p189 = scmp.ge.s32.totalorder %s188, 1
                %s193 = sphi %s178, %s178
                %s194 = sphi %s173, %s173
              $region39: #{slayer_forward.1} parent=35 // loop_header_branch
                %191 = sbr.rel (%p189) target = $region43
              $region40: #{slayer_forward.1} parent=35 // loop_body
                %v195 = vld [vmem:[%s193] sm:%s186]
                %196 = vst [vmem:[%s194] sm:%s186] %v195
                %v197 = vld [vmem:[%s193 + $0x8] sm:%s186]
                %198 = vst [vmem:[%s194 + $0x8] sm:%s186] %v197
                %v199 = vld [vmem:[%s193 + $0x20] sm:%s186]
                %200 = vst [vmem:[%s194 + $0x10] sm:%s186] %v199
                %v201 = vld [vmem:[%s193 + $0x28] sm:%s186]
                %202 = vst [vmem:[%s194 + $0x18] sm:%s186] %v201
              $region41: #{slayer_forward.1} parent=35 // loop_footer
                %s192 = sadd.s32 1, %s188
              $region42: #{slayer_forward.1} parent=35 // loop_footer_branch
                %187 = sbr.rel target = $region38
              $region43: #{slayer_forward.1} parent=35 // loop_exit
                _
            $region36: #{slayer_forward.1} parent=27 // pred_fallthru
              _
          $region28: #{slayer_forward.1} parent=23 // pred_fallthru
            _
          %223 = vnop
        $region24: #{slayer_forward.1} parent=19 // pred_fallthru
          _
        // Predicated region
        $region59: #{slayer_forward.1} parent=19 // pred_check
          %p224 = pneg %p81
        $region60: #{slayer_forward.1} parent=19 // pred_check_branch
          %226 = sbr.rel (%p224) target = $region62
        $region61: #{slayer_forward.1} parent=19 // pred_region
          %s227 = smul.u32 2, %s21
          %p228 = scmp.lt.s32.totalorder %s19, 1
          %s229 = scalar_select %p228, %s19, 1
          %p230 = scmp.lt.s32.totalorder %s227, 1
          %s231 = scalar_select %p230, %s227, 1
          %s232 = smul.addr %s229, 2
          %s233 = sadd.s32 %s231, %s232
          %s234 = smul.addr %s233, 8
          %s235 = scalar_lea.vmem %s1, %s234
          %s236 = smul.u32 2, %s21
        $region62: #{slayer_forward.1} parent=19 // pred_fallthru
          _
      $region20: #{slayer_forward.1} parent=5 // pred_fallthru
        _
      %p237 = scmp.le.s32.totalorder 1, %s12
      %p238 = scmp.lt.s32.totalorder %s12, 3
      %p239 = pnand %p237, %p238
      %p240 = pneg %p239
      // Predicated region
      $region63: #{slayer_forward.1} parent=5 // pred_check
        _
      $region64: #{slayer_forward.1} parent=5 // pred_check_branch
        %242 = sbr.rel (%p239) target = $region66
      $region65: #{slayer_forward.1} parent=5 // pred_region
        %s243 = ssub.s32 %s12, 1
        %s244 = sand.u32 %s46, 1
        %s245 = sand.u32 %s46, 1
        %s246 = smul.addr %s245, 32
        %s247 = scalar_lea.vmem [#allocation2], %s246
        // Predicated region
        $region67: #{slayer_forward.1} parent=65 // pred_check
          %p248 = pneg %p59
        $region68: #{slayer_forward.1} parent=65 // pred_check_branch
          %250 = sbr.rel (%p248) target = $region70
        $region69: #{slayer_forward.1} parent=65 // pred_region
          _
        $region70: #{slayer_forward.1} parent=65 // pred_fallthru
          _
        %s251 = sand.u32 %s46, 1
        %s252 = sand.u32 %s46, 1
        %s253 = smul.addr %s252, 32
        %s254 = scalar_lea.vmem [#allocation2], %s253
        %p255 = pneg %p59
        %p256 = pneg %p56
        %s257 = smul.u32 2, %s24
        %p258 = scmp.lt.s32.totalorder %s22, 1
        %s259 = scalar_select %p258, %s22, 1
        %p260 = scmp.lt.s32.totalorder %s257, 1
        %s261 = scalar_select %p260, %s257, 1
        %s262 = smul.addr %s259, 2
        %s263 = sadd.s32 %s261, %s262
        %s264 = smul.addr %s263, 8
        %s265 = scalar_lea.vmem %s1, %s264
        %p266 = pneg %p87
        %p267 = pneg %p84
        %p268 = scmp.lt.s32.totalorder %s23, 0
        %s269 = scalar_select %p268, %s23, 0
        %s270 = smul.addr %s269, 8
        %s271 = scalar_lea.vmem %s2, %s270
        %p272 = pneg %p113
        %p273 = pneg %p110
        %p274 = pneg %p141
        %p275 = pneg %p138
        %s276 = sand.u32 %s128, 1
        %s277 = scalar_lea.sflag [#allocation4], %s276
        %s278 = sand.u32 %s128, 1
        %s279 = scalar_lea.vmem [#allocation3], %s278
        %s280 = smul.u32 2, %s24
        %s281 = smul.u32 2, %s24
        %p282 = scmp.lt.s32.totalorder %s22, 1
        %s283 = scalar_select %p282, %s22, 1
        %p284 = scmp.lt.s32.totalorder %s281, 1
        %s285 = scalar_select %p284, %s281, 1
        %s286 = smul.addr %s283, 2
        %s287 = sadd.s32 %s285, %s286
        %s288 = smul.addr %s287, 8
        %s289 = scalar_lea.vmem %s1, %s288
        %s290 = smul.u32 2, %s24
        %p291 = scmp.lt.s32.totalorder %s23, 0
        %s292 = scalar_select %p291, %s23, 0
        %s293 = smul.addr %s292, 8
        %s294 = scalar_lea.vmem %s2, %s293
        %p295 = scmp.eq.s32.totalorder %s24, 0
        // Predicated region
        $region71: #{slayer_forward.1} parent=65 // pred_check
          %p296 = pneg %p295
        $region72: #{slayer_forward.1} parent=65 // pred_check_branch
          %298 = sbr.rel (%p296) target = $region74
        $region73: #{slayer_forward.1} parent=65 // pred_region
          %299 = vst [vmem:[%s279] sm:$0x1] 0.0
        $region74: #{slayer_forward.1} parent=65 // pred_fallthru
          _
        %v300 = vld [vmem:[%s294] sm:$0x1f]
        %v301 = vperm.slane %v300, 0
        %v302 = vperm.slane %v300, 1
        %v303 = vperm.slane %v300, 2
        %v304 = vperm.slane %v300, 3
        %v305 = vperm.slane %v300, 4
        %v306 = vld [vmem:[%s289] sm:$0xff]
        %308 = vset.pattern.permute.xlu0 0
        %309 = vperm.xlu0 %308, %v306
        %v310 = vpop.permute.xlu0 %309
        %v312 = vadd.f32 %v305, %v310
        %v313 = vld [vmem:[%s247] sm:$0xff]
        %315 = vset.pattern.permute.xlu0 0
        %316 = vperm.xlu0 %315, %v313
        %v317 = vpop.permute.xlu0 %316
        %v319 = vmul.f32 %v317, %v303
        %v320 = vadd.f32 %v319, %v301
        %v321 = vmul.f32 %v317, %v320
        %v322 = vadd.f32 %v312, %v321
        %s323 = sadd.s32 0, 16
        %s324 = scalar_lea.vmem %s247, %s323 [#allocation2]
        %v325 = vld [vmem:[%s324] sm:$0xff]
        %327 = vset.pattern.permute.xlu0 0
        %328 = vperm.xlu0 %327, %v325
        %v329 = vpop.permute.xlu0 %328
        %v331 = vmul.f32 %v329, %v304
        %v332 = vadd.f32 %v331, %v302
        %v333 = vmul.f32 %v329, %v332
        %v334 = vadd.f32 %v322, %v333
        %v335 = vmul.f32 %v334, 1.442695
        %v336 = vpow.pop %v335
        %v337 = vadd.f32 %v336, 0.0
        %s338 = scalar_lea.vmem %s289, 8
        %v339 = vld [vmem:[%s338] sm:$0xff]
        %341 = vset.pattern.permute.xlu0 0
        %342 = vperm.xlu0 %341, %v339
        %v343 = vpop.permute.xlu0 %342
        %v345 = vadd.f32 %v305, %v343
        %s346 = scalar_lea.vmem %s247, 8 [#allocation2]
        %v347 = vld [vmem:[%s346] sm:$0xff]
        %349 = vset.pattern.permute.xlu0 0
        %350 = vperm.xlu0 %349, %v347
        %v351 = vpop.permute.xlu0 %350
        %v353 = vmul.f32 %v351, %v303
        %v354 = vadd.f32 %v353, %v301
        %v355 = vmul.f32 %v351, %v354
        %v356 = vadd.f32 %v345, %v355
        %s357 = sadd.s32 8, 16
        %s358 = scalar_lea.vmem %s247, %s357 [#allocation2]
        %v359 = vld [vmem:[%s358] sm:$0xff]
        %361 = vset.pattern.permute.xlu0 0
        %362 = vperm.xlu0 %361, %v359
        %v363 = vpop.permute.xlu0 %362
        %v365 = vmul.f32 %v363, %v304
        %v366 = vadd.f32 %v365, %v302
        %v367 = vmul.f32 %v363, %v366
        %v368 = vadd.f32 %v356, %v367
        %v369 = vmul.f32 %v368, 1.442695
        %v370 = vpow.pop %v369
        %v371 = vadd.f32 %v337, %v370
        %v372 = vld [vmem:[%s279] sm:$0x1]
        %v373 = vrot.slane %v371, 4
        %v374 = vadd.f32 %v371, %v373
        %v375 = vrot.slane %v374, 2
        %v376 = vadd.f32 %v374, %v375
        %v377 = vrot.slane %v376, 1
        %v378 = vadd.f32 %v376, %v377
        %v379 = vadd.f32 %v372, %v378
        %380 = vst [vmem:[%s279] sm:$0x1] %v379
        %s381 = sand.u32 %s128, 1
        %s382 = scalar_lea.sflag [#allocation4], %s381
        %s383 = sand.u32 %s128, 1
        %s384 = scalar_lea.vmem [#allocation3], %s383
        // Predicated region
        $region75: #{slayer_forward.1} parent=65 // pred_check
          %p385 = pneg %p138
        $region76: #{slayer_forward.1} parent=65 // pred_check_branch
          %387 = sbr.rel (%p385) target = $region78
        $region77: #{slayer_forward.1} parent=65 // pred_region
          %389 = vsyncadd %s382, 0
          %s390 = sadd.s32 %s23, %s22
          %s391 = scalar_lea.hbm %s3, %s390
          %s393 = sshll.u32 %s384, 4
          %s394 = int_to_ptr.vmem [resolvable:$true] %s393
          %s395 = sshll.u32 %s391, 4
          %s396 = int_to_ptr.hbm [resolvable:$true] %s395
          %398 = dma.vmem_to_hbm [thread:$0]  %s394, 16, %s396, %s382
        $region78: #{slayer_forward.1} parent=65 // pred_fallthru
          _
      $region66: #{slayer_forward.1} parent=5 // pred_fallthru
        _
      %p399 = scmp.le.s32.totalorder 2, %s12
      // Predicated region
      $region79: #{slayer_forward.1} parent=5 // pred_check
        %p400 = pneg %p399
      $region80: #{slayer_forward.1} parent=5 // pred_check_branch
        %402 = sbr.rel (%p400) target = $region82
      $region81: #{slayer_forward.1} parent=5 // pred_region
        %s403 = ssub.s32 %s12, 2
        // Predicated region
        $region83: #{slayer_forward.1} parent=81 // pred_check
          %p404 = pneg %p144
        $region84: #{slayer_forward.1} parent=81 // pred_check_branch
          %406 = sbr.rel (%p404) target = $region86
        $region85: #{slayer_forward.1} parent=81 // pred_region
          %s407 = sand.u32 %s129, 1
          %s408 = scalar_lea.sflag [#allocation4], %s407
          %s409 = sand.u32 %s129, 1
          %s410 = scalar_lea.vmem [#allocation3], %s409
          %412 = dma.done %s408, 16
        $region86: #{slayer_forward.1} parent=81 // pred_fallthru
          _
      $region82: #{slayer_forward.1} parent=5 // pred_fallthru
        _
    $region6: #{slayer_forward.1} parent=1 // loop_footer
      %s16 = sadd.s32 1, %s12
    $region7: #{slayer_forward.1} parent=1 // loop_footer_branch
      %11 = sbr.rel target = $region3
    $region8: #{slayer_forward.1} parent=1 // loop_exit
      _
    %413 = vsyncpa [#allocation4], 1
    %s414 = scalar_lea.sflag [#allocation4], 1
    %415 = vsyncpa %s414, 1

</llo_original>
